<compile_context>
chip_gen: v7x
topology: tpu7x:2x2x1
jax: 0.10.0
libtpu: 0.0.40
codegen_flags: <defaults>
</compile_context>

<pallas_src>
import functools

import jax
import jax.numpy as jnp
from jax import lax
from jax.experimental import pallas as pl
from jax.experimental.pallas import tpu as pltpu


_TARGET_BLOCK_BYTES = 4 << 20   # aim for ~4 MiB of HBM traffic per grid step


# ---------------------------------------------------------------------------
# Generation-aware VMEM / core-count queries
# ---------------------------------------------------------------------------
@functools.lru_cache(maxsize=None)
def _vmem_capacity_bytes():
    try:
        cap = int(pltpu.get_tpu_info().vmem_capacity_bytes)
        if cap > 0:
            return cap
    except Exception:
        pass
    return 64 << 20           # conservative fallback (v7x per-TC)


@functools.lru_cache(maxsize=None)
def _num_tensorcores():
    """1 for single-TC chips (v5e / v6e), 2 otherwise (v4 / v5p / v7x)."""
    try:
        kind = jax.devices()[0].device_kind.lower()
    except Exception:
        return 2
    if "lite" in kind or "v5e" in kind or "v6e" in kind or "trillium" in kind:
        return 1
    return 2


def _vmem_limit_bytes():
    # 48 MiB on v7x (64 MiB physical per TC), 96 MiB on v5e/v6e (128 MiB).
    return min(100 << 20, max(32 << 20, (_vmem_capacity_bytes() * 3) // 4))


def _resident_budget_bytes():
    return (_vmem_limit_bytes() * 4) // 5


def _cparams(dims):
    return pltpu.CompilerParams(dimension_semantics=dims,
                                vmem_limit_bytes=_vmem_limit_bytes())


# ---------------------------------------------------------------------------
# Path 1: whole image(s) resident in VMEM, one pass over x.
# ---------------------------------------------------------------------------
def _resident_kernel(x_ref, wm_ref, w1_ref, b1_ref, w2_ref, b2_ref, o_ref):
    """x_ref: (Bt, C, HW); wm_ref: (1, C); w1_ref: (P, C); b1_ref: (1, P);
    w2_ref: (C, P); b2_ref: (1, C)."""
    f32 = jnp.float32
    x = x_ref[...]                                    # native dtype, no full-tile cast
    bt, c, _ = x.shape

    # conv_mask (1x1 conv C->1): batched MXU contraction over C.
    # (The wm broadcast is only Bt*C elements; the big w1/w2 stay 2-D.)
    wm_b = jnp.broadcast_to(wm_ref[...][None], (bt, 1, c))
    logits = jnp.einsum("boc,bcs->bos", wm_b, x, preferred_element_type=f32)  # (Bt,1,HW)
    # conv_mask bias omitted: softmax over the spatial axis is shift-invariant.

    # softmax over spatial positions (lane axis) in f32; exact per-image reciprocal.
    m = jnp.max(logits, axis=-1, keepdims=True)
    e = jnp.exp(logits - m)
    inv = 1.0 / jnp.sum(e, axis=-1, keepdims=True)
    att = (e * inv).astype(x.dtype)                   # (Bt, 1, HW)

    # attention-pooled context: MXU contraction over HW, lane-dense result.
    ctx = jnp.einsum("bos,bcs->boc", att, x, preferred_element_type=f32)      # (Bt,1,C)
    ctx = ctx.reshape(bt, c)                          # (Bt, C)

    # channel_add MLP as plain 2-D matmuls (weights shared across the batch).
    w1 = w1_ref[...].astype(f32)
    w2 = w2_ref[...].astype(f32)
    hidden = lax.dot_general(ctx, w1, (((1,), (1,)), ((), ())),
                             preferred_element_type=f32) + b1_ref[...]
    hidden = jnp.maximum(hidden, 0.0)                 # (Bt, P)
    term = lax.dot_general(hidden, w2, (((1,), (1,)), ((), ())),
                           preferred_element_type=f32) + b2_ref[...]          # (Bt, C)

    term_col = term.astype(x.dtype)[:, :, None]       # (Bt, C, 1)
    o_ref[...] = (x + term_col).astype(o_ref.dtype)


# ---------------------------------------------------------------------------
# Path 2 / pass 1: online-softmax context over HW tiles + channel_add MLP.
# ---------------------------------------------------------------------------
def _context_kernel(x_ref, wm_ref, w1_ref, b1_ref, w2_ref, b2_ref,
                    term_ref, m_sc, s_sc, ctx_sc, *, hw, lane_tile):
    k = pl.program_id(1)
    nk = pl.num_programs(1)
    f32 = jnp.float32

    @pl.when(k == 0)
    def _init():
        m_sc[...] = jnp.full(m_sc.shape, -1e30, m_sc.dtype)
        s_sc[...] = jnp.zeros(s_sc.shape, s_sc.dtype)
        ctx_sc[...] = jnp.zeros(ctx_sc.shape, ctx_sc.dtype)

    # Ragged last tile: the out-of-bounds tail of the block holds stale VMEM, so
    # mask x itself (0 * garbage could otherwise produce NaN in the contraction).
    pos = k * lane_tile + lax.broadcasted_iota(jnp.int32, (1, lane_tile), 1)
    valid = pos < hw                                              # (1, T)
    x = jnp.where(valid, x_ref[0], 0)                             # (C, T), native dtype

    # conv_mask logits for this tile -> MXU.  Bias omitted (shift-invariant).
    logits = jnp.dot(wm_ref[...], x, preferred_element_type=f32)  # (1, T)
    logits = jnp.where(valid, logits, -1e30)

    m_prev = m_sc[...]
    m_new = jnp.maximum(m_prev, jnp.max(logits, axis=-1, keepdims=True))
    scale = jnp.exp(m_prev - m_new)                               # (1, 1)
    e = jnp.where(valid, jnp.exp(logits - m_new), 0.0)            # (1, T) f32

    s_sc[...] = s_sc[...] * scale + jnp.sum(e, axis=-1, keepdims=True)
    # lane-dense pooled-context accumulator: (1, C) += e @ x^T (contract HW, MXU).
    ctx_sc[...] = ctx_sc[...] * scale + lax.dot_general(
        e.astype(x.dtype), x, (((1,), (1,)), ((), ())), preferred_element_type=f32)
    m_sc[...] = m_new

    @pl.when(k == nk - 1)
    def _finalize():
        context = ctx_sc[...] * (1.0 / s_sc[...])                 # exact; (1, C)
        w1 = w1_ref[...].astype(f32)
        w2 = w2_ref[...].astype(f32)
        hidden = lax.dot_general(context, w1, (((1,), (1,)), ((), ())),
                                 preferred_element_type=f32) + b1_ref[...]
        hidden = jnp.maximum(hidden, 0.0)                         # (1, P)
        term = lax.dot_general(hidden, w2, (((1,), (1,)), ((), ())),
                               preferred_element_type=f32) + b2_ref[...]      # (1, C)
        term_ref[...] = term.reshape(1, 1, -1).astype(term_ref.dtype)


# ---------------------------------------------------------------------------
# Path 2 / pass 2: out = x + term (broadcast over HW), fully parallel.
# ---------------------------------------------------------------------------
def _broadcast_add_kernel(x_ref, term_ref, o_ref):
    # x_ref/o_ref: (1, Ct, T); term_ref: (1, Ct, 1)
    o_ref[...] = x_ref[...] + term_ref[...].astype(x_ref.dtype)


# ---------------------------------------------------------------------------
# Tiling helpers
# ---------------------------------------------------------------------------
def _divisor_tile(total, step, cap):
    """Largest multiple of `step` that divides `total` and is <= cap (or None)."""
    cand = (min(cap, total) // step) * step
    while cand >= step:
        if total % cand == 0:
            return cand
        cand -= step
    return None


def _pick_hw_tile(hw, c, itemsize, weight_bytes, override=None):
    """Lane (HW) tile for pass 1: multiple of 128 (or full HW), VMEM-aware size."""
    if override is not None:
        t = max(128, (override // 128) * 128)
    else:
        # x tile appears ~3x in VMEM (double buffer + masked copy); leave room
        # for the (double-buffered) weights and general slack.
        budget = max(1 << 20, (_vmem_limit_bytes() - weight_bytes - (6 << 20)) // 3)
        target = min(_TARGET_BLOCK_BYTES, budget)
        t = max(128, ((target // max(c * itemsize, 1)) // 128) * 128)
    if t >= hw:
        return hw                       # single full-extent block, no ragged tail
    if override is None:
        exact = _divisor_tile(hw, 128, t)
        if exact is not None and exact * 2 >= t:
            t = exact                   # prefer no ragged tail when nearly as big
    return t


# ---------------------------------------------------------------------------
# Wrapper
# ---------------------------------------------------------------------------
def context_block_forward(x, params, *, force_tiled=False, hw_tile=None):
    """ContextBlock forward (pooling='att', fusion=('channel_add',)).

    x: (B, C, H, W). Returns (B, C, H, W).
    """
    B, C, H, W = x.shape
    HW = H * W
    P = params["w1"].shape[0]
    itemsize = x.dtype.itemsize
    wdtype = x.dtype            # keep weight HBM/VMEM traffic in the input dtype

    x3 = x.reshape(B, C, HW)
    # conv_mask bias is omitted everywhere: softmax is shift-invariant, so it
    # cannot change the output of the attention pooling.
    wm = params["w_mask"].reshape(1, C).astype(wdtype)
    w1 = params["w1"].reshape(P, C).astype(wdtype)
    b1 = params["b1"].reshape(1, P).astype(jnp.float32)
    w2 = params["w2"].reshape(C, P).astype(jnp.float32).astype(wdtype)
    b2 = params["b2"].reshape(1, C).astype(jnp.float32)

    per_image = C * HW * itemsize
    weight_bytes = 2 * ((2 * C * P + C) * itemsize + (C + P) * 4)  # double-buffered

    def _resident_need(bt_):
        # x & out blocks (double-buffered) + f32 softmax temps + MLP intermediates.
        return bt_ * (4 * per_image + 12 * HW + 16 * C) + weight_bytes + (2 << 20)

    budget = _resident_budget_bytes()
    use_resident = (not force_tiled) and _resident_need(1) <= budget

    if use_resident:
        # Images per grid step: big enough to amortize per-step overhead, while
        # keeping >= num_tensorcores parallel steps when there is more than one
        # core (no reservation on single-TC v5e/v6e).
        cores = _num_tensorcores()
        bt_cap = B if cores <= 1 else max(1, B // cores)
        divisors = [d for d in range(1, B + 1) if B % d == 0]
        fitting = [d for d in divisors if d <= bt_cap and _resident_need(d) <= budget]
        if not fitting:
            fitting = [1]
        big = [d for d in fitting if d * per_image >= _TARGET_BLOCK_BYTES]
        bt = min(big) if big else max(fitting)

        out = pl.pallas_call(
            _resident_kernel,
            out_shape=jax.ShapeDtypeStruct((B, C, HW), x.dtype),
            grid=(B // bt,),
            in_specs=[
                pl.BlockSpec((bt, C, HW), lambda i: (i, 0, 0)),   # x
                pl.BlockSpec((1, C), lambda i: (0, 0)),           # grid-invariant weights
                pl.BlockSpec((P, C), lambda i: (0, 0)),
                pl.BlockSpec((1, P), lambda i: (0, 0)),
                pl.BlockSpec((C, P), lambda i: (0, 0)),
                pl.BlockSpec((1, C), lambda i: (0, 0)),
            ],
            out_specs=pl.BlockSpec((bt, C, HW), lambda i: (i, 0, 0)),
            compiler_params=_cparams(("parallel",)),
        )(x3, wm, w1, b1, w2, b2)
        return out.reshape(B, C, H, W)

    # ---- tiled path ------------------------------------------------------
    # Pass 1: online-softmax context + channel_add MLP -> term (B, 1, C).
    # No jnp.pad of x: the last HW tile may be ragged and is masked in-kernel.
    t = _pick_hw_tile(HW, C, itemsize, weight_bytes, override=hw_tile)
    nk = pl.cdiv(HW, t)

    term_row = pl.pallas_call(
        functools.partial(_context_kernel, hw=HW, lane_tile=t),
        out_shape=jax.ShapeDtypeStruct((B, 1, C), jnp.float32),
        grid=(B, nk),
        in_specs=[
            pl.BlockSpec((1, C, t), lambda b, k: (b, 0, k)),
            pl.BlockSpec((1, C), lambda b, k: (0, 0)),
            pl.BlockSpec((P, C), lambda b, k: (0, 0)),
            pl.BlockSpec((1, P), lambda b, k: (0, 0)),
            pl.BlockSpec((C, P), lambda b, k: (0, 0)),
            pl.BlockSpec((1, C), lambda b, k: (0, 0)),
        ],
        out_specs=pl.BlockSpec((1, 1, C), lambda b, k: (b, 0, 0)),
        scratch_shapes=[
            pltpu.VMEM((1, 1), jnp.float32),   # running max
            pltpu.VMEM((1, 1), jnp.float32),   # running sum(exp)
            pltpu.VMEM((1, C), jnp.float32),   # running pooled context (lane-dense)
        ],
        compiler_params=_cparams(("parallel", "arbitrary")),
    )(x3, wm, w1, b1, w2, b2)

    # Tiny (B*C element) layout fixup outside Pallas: (B,1,C) -> (B,C,1).
    term_col = jnp.swapaxes(term_row, 1, 2)

    # Pass 2: out = x + term, broadcast over HW.
    if HW % 128 == 0:
        ct = C
        cap = max(128, ((_TARGET_BLOCK_BYTES // max(C * itemsize, 1)) // 128) * 128)
        if hw_tile is not None:
            cap = max(128, hw_tile)
        st = _divisor_tile(HW, 128, cap) or HW
    else:
        # Lane dim must be a multiple of 128 or the full extent: keep full HW
        # and tile the channel (sublane) axis instead.
        st = HW
        cap = max(8, ((_TARGET_BLOCK_BYTES // max(HW * itemsize, 1)) // 8) * 8)
        ct = _divisor_tile(C, 8, cap) or C

    out = pl.pallas_call(
        _broadcast_add_kernel,
        out_shape=jax.ShapeDtypeStruct((B, C, HW), x.dtype),
        grid=(B, C // ct, HW // st),
        in_specs=[
            pl.BlockSpec((1, ct, st), lambda b, ci, si: (b, ci, si)),
            pl.BlockSpec((1, ct, 1), lambda b, ci, si: (b, ci, 0)),
        ],
        out_specs=pl.BlockSpec((1, ct, st), lambda b, ci, si: (b, ci, si)),
        compiler_params=_cparams(("parallel", "parallel", "parallel")),
    )(x3, term_col)
    return out.reshape(B, C, H, W)


# ---------------------------------------------------------------------------
# Pure-JAX reference (mirrors the PyTorch forward: att pooling + channel_add)
# ---------------------------------------------------------------------------
def context_block_reference(x, params):
    B, C, H, W = x.shape
    HW = H * W
    xf = x.reshape(B, C, HW)
    wm = params["w_mask"].reshape(1, C)
    logits = jnp.einsum("oc,bcs->bos", wm, xf) + params["b_mask"].reshape(1, 1, 1)
    p = jax.nn.softmax(logits, axis=-1)
    context = jnp.einsum("bcs,bos->bc", xf, p)
    P = params["w1"].shape[0]
    w1 = params["w1"].reshape(P, C)
    w2 = params["w2"].reshape(C, P)
    hidden = jax.nn.relu(context @ w1.T + params["b1"])
    term = hidden @ w2.T + params["b2"]
    return x + term[:, :, None, None]


if __name__ == "__main__":
    # Module config: inplanes=8, ratio=0.5 -> planes=4, pooling='att', fusion=('channel_add',)
    B, C, H, W = 2, 8, 16, 16
    ratio = 0.5
    P = int(C * ratio)

    key = jax.random.PRNGKey(0)
    kx, k0, k1, k2, k3, k4, kx2 = jax.random.split(key, 7)
    x = jax.random.normal(kx, (B, C, H, W), dtype=jnp.float32)

    # NOTE: reset_parameters() zero-inits the last conv (last_zero_init), which
    # would make channel_add_term identically 0; use small nonzero values so the
    # kernel's full compute path is exercised.
    params = {
        "w_mask": 0.2 * jax.random.normal(k0, (1, C, 1, 1), dtype=jnp.float32),
        "b_mask": jnp.full((1,), 0.3, dtype=jnp.float32),
        "w1": 0.2 * jax.random.normal(k1, (P, C, 1, 1), dtype=jnp.float32),
        "b1": 0.1 * jax.random.normal(k2, (P,), dtype=jnp.float32),
        "w2": 0.2 * jax.random.normal(k3, (C, P, 1, 1), dtype=jnp.float32),
        "b2": 0.05 * jax.random.normal(k4, (C,), dtype=jnp.float32),
    }

    ref = context_block_reference(x, params)

    # Path 1: VMEM-resident path (taken automatically at this size).
    out = jax.block_until_ready(context_block_forward(x, params))
    assert out.shape == (B, C, H, W)
    assert jnp.allclose(out, ref, atol=1e-4, rtol=1e-4), "resident path mismatch"

    # Path 2: HW-tiled online-softmax path; force a 128-lane tile so the
    # cross-tile accumulation is exercised (HW=256 -> 2 full tiles).
    out_t = jax.block_until_ready(
        context_block_forward(x, params, force_tiled=True, hw_tile=128))
    assert jnp.allclose(out_t, ref, atol=1e-4, rtol=1e-4), "tiled path mismatch"

    # Ragged HW (288 = 2*128 + 32): exercises the no-pad masked-tail handling.
    x2 = jax.random.normal(kx2, (1, C, 16, 18), dtype=jnp.float32)
    ref2 = context_block_reference(x2, params)
    out2 = jax.block_until_ready(
        context_block_forward(x2, params, force_tiled=True, hw_tile=128))
    assert jnp.allclose(out2, ref2, atol=1e-4, rtol=1e-4), "ragged tiled path mismatch"

    print("KERNEL_OK")
</pallas_src>

<mosaic_0001>
module attributes {stable_mosaic.version = 11 : i64} {
  func.func @_resident_kernel(%arg0: i32, %arg1: memref<1x8x256xf32, #tpu.memory_space<vmem>>, %arg2: memref<1x8xf32, #tpu.memory_space<vmem>>, %arg3: memref<4x8xf32, #tpu.memory_space<vmem>>, %arg4: memref<1x4xf32, #tpu.memory_space<vmem>>, %arg5: memref<8x4xf32, #tpu.memory_space<vmem>>, %arg6: memref<1x8xf32, #tpu.memory_space<vmem>>, %arg7: memref<1x8x256xf32, #tpu.memory_space<vmem>>) attributes {dimension_semantics = [#tpu.dimension_semantics<parallel>], iteration_bounds = array<i64: 2>, scalar_prefetch = 0 : i64, scratch_operands = 0 : i64, tpu.core_type = #tpu.core_type<tc>, window_params = [{transform_indices = @transform_0, window_bounds = array<i64: 1, 8, 256>}, {pipeline_mode = #tpu.pipeline_mode<synchronous>, transform_indices = @transform_1, window_bounds = array<i64: 1, 8>}, {pipeline_mode = #tpu.pipeline_mode<synchronous>, transform_indices = @transform_2, window_bounds = array<i64: 4, 8>}, {pipeline_mode = #tpu.pipeline_mode<synchronous>, transform_indices = @transform_3, window_bounds = array<i64: 1, 4>}, {pipeline_mode = #tpu.pipeline_mode<synchronous>, transform_indices = @transform_4, window_bounds = array<i64: 8, 4>}, {pipeline_mode = #tpu.pipeline_mode<synchronous>, transform_indices = @transform_5, window_bounds = array<i64: 1, 8>}, {transform_indices = @transform_6, window_bounds = array<i64: 1, 8, 256>}]} {
    %c0 = arith.constant 0 : index
    %c0_0 = arith.constant 0 : index
    %c0_1 = arith.constant 0 : index
    %0 = vector.load %arg1[%c0, %c0_0, %c0_1] : memref<1x8x256xf32, #tpu.memory_space<vmem>>, vector<1x8x256xf32>
    %c0_2 = arith.constant 0 : index
    %c0_3 = arith.constant 0 : index
    %1 = vector.load %arg2[%c0_2, %c0_3] : memref<1x8xf32, #tpu.memory_space<vmem>>, vector<1x8xf32>
    %2 = vector.shape_cast %1 : vector<1x8xf32> to vector<1x1x8xf32>
    "tpu.trace_start"() <{level = 10 : i32, message = "boc,bcs->bos"}> : () -> ()
    %cst = arith.constant dense<0.000000e+00> : vector<1x1x256xf32>
    %3 = tpu.matmul %2, %0, %cst {dimension_numbers = #tpu.dot_dimension_numbers<[2], [1], [1], [2], [0, 0, 0, 1, 1, 2], [0], [0]>} : vector<1x1x8xf32>, vector<1x8x256xf32>, vector<1x1x256xf32> -> vector<1x1x256xf32>
    "tpu.trace_stop"() : () -> ()
    %cst_4 = arith.constant dense<0xFF800000> : vector<1x1xf32>
    %4 = vector.multi_reduction <maximumf>, %3, %cst_4 [2] : vector<1x1x256xf32> to vector<1x1xf32>
    %5 = vector.shape_cast %4 : vector<1x1xf32> to vector<1x1x1xf32>
    %6 = vector.broadcast %5 : vector<1x1x1xf32> to vector<1x1x256xf32>
    %7 = arith.subf %3, %6 : vector<1x1x256xf32>
    %8 = math.exp %7 : vector<1x1x256xf32>
    %cst_5 = arith.constant dense<0.000000e+00> : vector<1x1xf32>
    %9 = vector.multi_reduction <add>, %8, %cst_5 [2] : vector<1x1x256xf32> to vector<1x1xf32>
    %10 = vector.shape_cast %9 : vector<1x1xf32> to vector<1x1x1xf32>
    %cst_6 = arith.constant 1.000000e+00 : f32
    %11 = vector.broadcast %cst_6 : f32 to vector<1x1x1xf32>
    %12 = arith.divf %11, %10 : vector<1x1x1xf32>
    %13 = vector.broadcast %12 : vector<1x1x1xf32> to vector<1x1x256xf32>
    %14 = arith.mulf %8, %13 : vector<1x1x256xf32>
    "tpu.trace_start"() <{level = 10 : i32, message = "bos,bcs->boc"}> : () -> ()
    %cst_7 = arith.constant dense<0.000000e+00> : vector<1x1x8xf32>
    %15 = tpu.matmul %14, %0, %cst_7 {dimension_numbers = #tpu.dot_dimension_numbers<[2], [2], [1], [1], [0, 0, 0, 1, 1, 1], [0], [0]>} : vector<1x1x256xf32>, vector<1x8x256xf32>, vector<1x1x8xf32> -> vector<1x1x8xf32>
    "tpu.trace_stop"() : () -> ()
    %16 = vector.shape_cast %15 : vector<1x1x8xf32> to vector<1x8xf32>
    %c0_8 = arith.constant 0 : index
    %c0_9 = arith.constant 0 : index
    %17 = vector.load %arg3[%c0_8, %c0_9] : memref<4x8xf32, #tpu.memory_space<vmem>>, vector<4x8xf32>
    %c0_10 = arith.constant 0 : index
    %c0_11 = arith.constant 0 : index
    %18 = vector.load %arg5[%c0_10, %c0_11] : memref<8x4xf32, #tpu.memory_space<vmem>>, vector<8x4xf32>
    %cst_12 = arith.constant dense<0.000000e+00> : vector<1x4xf32>
    %19 = tpu.matmul %16, %17, %cst_12 {dimension_numbers = #tpu.dot_dimension_numbers<[1], [1], [0], [0], [0, 0, 1, 0], [], []>} : vector<1x8xf32>, vector<4x8xf32>, vector<1x4xf32> -> vector<1x4xf32>
    %c0_13 = arith.constant 0 : index
    %c0_14 = arith.constant 0 : index
    %20 = vector.load %arg4[%c0_13, %c0_14] : memref<1x4xf32, #tpu.memory_space<vmem>>, vector<1x4xf32>
    %21 = arith.addf %19, %20 : vector<1x4xf32>
    %cst_15 = arith.constant 0.000000e+00 : f32
    %22 = vector.broadcast %cst_15 : f32 to vector<1x4xf32>
    %23 = arith.maximumf %21, %22 : vector<1x4xf32>
    %cst_16 = arith.constant dense<0.000000e+00> : vector<1x8xf32>
    %24 = tpu.matmul %23, %18, %cst_16 {dimension_numbers = #tpu.dot_dimension_numbers<[1], [1], [0], [0], [0, 0, 1, 0], [], []>} : vector<1x4xf32>, vector<8x4xf32>, vector<1x8xf32> -> vector<1x8xf32>
    %c0_17 = arith.constant 0 : index
    %c0_18 = arith.constant 0 : index
    %25 = vector.load %arg6[%c0_17, %c0_18] : memref<1x8xf32, #tpu.memory_space<vmem>>, vector<1x8xf32>
    %26 = arith.addf %24, %25 : vector<1x8xf32>
    %27 = vector.shape_cast %26 : vector<1x8xf32> to vector<1x8x1xf32>
    %28 = vector.broadcast %27 : vector<1x8x1xf32> to vector<1x8x256xf32>
    %29 = arith.addf %0, %28 : vector<1x8x256xf32>
    %c0_19 = arith.constant 0 : index
    %c0_20 = arith.constant 0 : index
    %c0_21 = arith.constant 0 : index
    %30 = vector.load %arg7[%c0_19, %c0_20, %c0_21] : memref<1x8x256xf32, #tpu.memory_space<vmem>>, vector<1x8x256xf32>
    tpu.vector_store %arg7[%c0_19, %c0_20, %c0_21], %29 {strides = array<i32>} : memref<1x8x256xf32, #tpu.memory_space<vmem>>, vector<1x8x256xf32>,
    return
  }
  func.func @transform_0(%arg0: i32) -> (i32, i32, i32) {
    %c0_i32 = arith.constant 0 : i32
    %c0_i32_0 = arith.constant 0 : i32
    %c0_i32_1 = arith.constant 0 : i32
    return %arg0, %c0_i32, %c0_i32_0 : i32, i32, i32
  }
  func.func @transform_1(%arg0: i32) -> (i32, i32) {
    %c0_i32 = arith.constant 0 : i32
    %c0_i32_0 = arith.constant 0 : i32
    %c0_i32_1 = arith.constant 0 : i32
    return %c0_i32, %c0_i32_0 : i32, i32
  }
  func.func @transform_2(%arg0: i32) -> (i32, i32) {
    %c0_i32 = arith.constant 0 : i32
    %c0_i32_0 = arith.constant 0 : i32
    %c0_i32_1 = arith.constant 0 : i32
    return %c0_i32, %c0_i32_0 : i32, i32
  }
  func.func @transform_3(%arg0: i32) -> (i32, i32) {
    %c0_i32 = arith.constant 0 : i32
    %c0_i32_0 = arith.constant 0 : i32
    %c0_i32_1 = arith.constant 0 : i32
    return %c0_i32, %c0_i32_0 : i32, i32
  }
  func.func @transform_4(%arg0: i32) -> (i32, i32) {
    %c0_i32 = arith.constant 0 : i32
    %c0_i32_0 = arith.constant 0 : i32
    %c0_i32_1 = arith.constant 0 : i32
    return %c0_i32, %c0_i32_0 : i32, i32
  }
  func.func @transform_5(%arg0: i32) -> (i32, i32) {
    %c0_i32 = arith.constant 0 : i32
    %c0_i32_0 = arith.constant 0 : i32
    %c0_i32_1 = arith.constant 0 : i32
    return %c0_i32, %c0_i32_0 : i32, i32
  }
  func.func @transform_6(%arg0: i32) -> (i32, i32, i32) {
    %c0_i32 = arith.constant 0 : i32
    %c0_i32_0 = arith.constant 0 : i32
    %c0_i32_1 = arith.constant 0 : i32
    return %arg0, %c0_i32, %c0_i32_0 : i32, i32, i32
  }
}

</mosaic_0001>

<llo_original>
// kernel: tpu_custom_call.1
$region0: #{tpu_custom_call.1}
  #allocation0 [shape = 'u32[]', space=smem, size = 0x4, offset = 0x4, fixed_abs, tag = 'smem constant byte address 0x4 - core index']
  #allocation1 [shape = 'u32[144,128]{1,0:T(1,128)}', space=vmem, size = 0x12000, scoped, tag = 'internal scratch']
  %s0 = inlined_call_operand.hbm [shape: f32[2,8,256], index: 0, kind: input, shape index: {}]
  %s1 = inlined_call_operand.vmem [shape: f32[1,8], index: 1, kind: input, shape index: {}]
  %s2 = inlined_call_operand.vmem [shape: f32[4,8], index: 2, kind: input, shape index: {}]
  %s3 = inlined_call_operand.vmem [shape: f32[1,4], index: 3, kind: input, shape index: {}]
  %s4 = inlined_call_operand.vmem [shape: f32[8,4], index: 4, kind: input, shape index: {}]
  %s5 = inlined_call_operand.vmem [shape: f32[1,8], index: 5, kind: input, shape index: {}]
  %s6 = inlined_call_operand.hbm [shape: f32[2,8,256], index: 6, kind: output, shape index: {}]
  %s7 = sld [smem:[#allocation0]]
  $region61: #{tpu_custom_call.1} parent=0
    _
  %s9 = ssub.s32 1, %s7
  %s10 = scalar_select 0, %s9, %s7
  $region1: #{tpu_custom_call.1} parent=0
    #allocation2 [shape = 'u8[16384]{0}', space=vmem, size = 0x4000, scoped, tag = 'input window, operand 0']
    #allocation3 [shape = 's32[2]{0}', space=sflag, size = 0x8, scoped, tag = 'scoped memory for tpu_custom_call.1']
    #allocation4 [shape = 's32[2]{0}', space=sflag, size = 0x8, scoped, tag = 'scoped memory for tpu_custom_call.1']
    #allocation5 [shape = 'u8[16384]{0}', space=vmem, size = 0x4000, scoped, tag = 'output window, operand 0']
    %11 = vsyncpa [#allocation3], 0
    %s12 = scalar_lea.sflag [#allocation3], 1
    %13 = vsyncpa %s12, 0
    %14 = vsyncpa [#allocation4], 0
    %s15 = scalar_lea.sflag [#allocation4], 1
    %16 = vsyncpa %s15, 0
    loop: start=0, step=1, limit=4
    $region2: #{tpu_custom_call.1} parent=1 // loop_pre_header
      _
    $region3: #{tpu_custom_call.1} parent=1 // loop_header
      %s18 = sphi 0, %s22
      %p19 = scmp.ge.s32.totalorder %s18, 4
      %s28 = sphi 0, %s30
      %s31 = sphi 0, %s28
      %s32 = sphi 0, %s31
      %s48 = sphi 0, %s32
      %s52 = sphi 0, %s52
      %s54 = sphi 0, %s52
      %s55 = sphi 0, %s54
      %s69 = sphi 0, %s55
      %s73 = sphi 0, %s73
      %s75 = sphi 0, %s73
      %s76 = sphi 0, %s75
      %s90 = sphi 0, %s76
      %s94 = sphi 0, %s94
      %s96 = sphi 0, %s94
      %s97 = sphi 0, %s96
      %s111 = sphi 0, %s97
      %s115 = sphi 0, %s115
      %s117 = sphi 0, %s115
      %s118 = sphi 0, %s117
      %s132 = sphi 0, %s118
      %s136 = sphi 0, %s136
      %s138 = sphi 0, %s136
      %s139 = sphi 0, %s138
      %s153 = sphi 0, %s139
      %s159 = sphi 0, %s161
      %s162 = sphi 0, %s159
      %s163 = sphi 0, %s162
      %s179 = sphi 0, %s163
    $region4: #{tpu_custom_call.1} parent=1 // loop_header_branch
      %21 = sbr.rel (%p19) target = $region8
    $region5: #{tpu_custom_call.1} parent=1 // loop_body
      %s23 = ssub.s32 %s18, 1
      %s24 = ssub.s32 %s18, 2
      %s25 = sadd.s32 %s18, 1
      %s26 = ssub.s32 %s18, %s25
      %p27 = scmp.eq.s32.totalorder %s26, 0
      %s29 = sadd.s32 %s28, 1
      %s30 = scalar_select %p27, %s28, %s29
      %p33 = pneg %p27
      %p34 = scmp.eq.s32.totalorder %s18, 1
      %p35 = por %p33, %p34
      %p36 = scmp.ne.s32.totalorder %s28, %s31
      %p37 = scmp.eq.s32.totalorder %s18, 0
      %p38 = por %p36, %p37
      %p39 = scmp.ne.s32.totalorder %s28, %s31
      %p40 = scmp.eq.s32.totalorder %s23, 1
      %p41 = por %p39, %p40
      %p42 = scmp.ne.s32.totalorder %s31, %s32
      %p43 = scmp.eq.s32.totalorder %s23, 0
      %p44 = por %p42, %p43
      %p45 = scmp.ne.s32.totalorder %s31, %s32
      %p46 = scmp.eq.s32.totalorder %s24, 1
      %p47 = por %p45, %p46
      %p49 = scmp.ne.s32.totalorder %s32, %s48
      %p50 = scmp.eq.s32.totalorder %s24, 0
      %p51 = por %p49, %p50
      %s53 = sadd.s32 %s52, 1
      %p56 = scmp.eq.s32.totalorder %s18, 1
      %p57 = scmp.ne.s32.totalorder %s52, %s54
      %p58 = scmp.eq.s32.totalorder %s18, 0
      %p59 = por %p57, %p58
      %p60 = scmp.ne.s32.totalorder %s52, %s54
      %p61 = scmp.eq.s32.totalorder %s23, 1
      %p62 = por %p60, %p61
      %p63 = scmp.ne.s32.totalorder %s54, %s55
      %p64 = scmp.eq.s32.totalorder %s23, 0
      %p65 = por %p63, %p64
      %p66 = scmp.ne.s32.totalorder %s54, %s55
      %p67 = scmp.eq.s32.totalorder %s24, 1
      %p68 = por %p66, %p67
      %p70 = scmp.ne.s32.totalorder %s55, %s69
      %p71 = scmp.eq.s32.totalorder %s24, 0
      %p72 = por %p70, %p71
      %s74 = sadd.s32 %s73, 1
      %p77 = scmp.eq.s32.totalorder %s18, 1
      %p78 = scmp.ne.s32.totalorder %s73, %s75
      %p79 = scmp.eq.s32.totalorder %s18, 0
      %p80 = por %p78, %p79
      %p81 = scmp.ne.s32.totalorder %s73, %s75
      %p82 = scmp.eq.s32.totalorder %s23, 1
      %p83 = por %p81, %p82
      %p84 = scmp.ne.s32.totalorder %s75, %s76
      %p85 = scmp.eq.s32.totalorder %s23, 0
      %p86 = por %p84, %p85
      %p87 = scmp.ne.s32.totalorder %s75, %s76
      %p88 = scmp.eq.s32.totalorder %s24, 1
      %p89 = por %p87, %p88
      %p91 = scmp.ne.s32.totalorder %s76, %s90
      %p92 = scmp.eq.s32.totalorder %s24, 0
      %p93 = por %p91, %p92
      %s95 = sadd.s32 %s94, 1
      %p98 = scmp.eq.s32.totalorder %s18, 1
      %p99 = scmp.ne.s32.totalorder %s94, %s96
      %p100 = scmp.eq.s32.totalorder %s18, 0
      %p101 = por %p99, %p100
      %p102 = scmp.ne.s32.totalorder %s94, %s96
      %p103 = scmp.eq.s32.totalorder %s23, 1
      %p104 = por %p102, %p103
      %p105 = scmp.ne.s32.totalorder %s96, %s97
      %p106 = scmp.eq.s32.totalorder %s23, 0
      %p107 = por %p105, %p106
      %p108 = scmp.ne.s32.totalorder %s96, %s97
      %p109 = scmp.eq.s32.totalorder %s24, 1
      %p110 = por %p108, %p109
      %p112 = scmp.ne.s32.totalorder %s97, %s111
      %p113 = scmp.eq.s32.totalorder %s24, 0
      %p114 = por %p112, %p113
      %s116 = sadd.s32 %s115, 1
      %p119 = scmp.eq.s32.totalorder %s18, 1
      %p120 = scmp.ne.s32.totalorder %s115, %s117
      %p121 = scmp.eq.s32.totalorder %s18, 0
      %p122 = por %p120, %p121
      %p123 = scmp.ne.s32.totalorder %s115, %s117
      %p124 = scmp.eq.s32.totalorder %s23, 1
      %p125 = por %p123, %p124
      %p126 = scmp.ne.s32.totalorder %s117, %s118
      %p127 = scmp.eq.s32.totalorder %s23, 0
      %p128 = por %p126, %p127
      %p129 = scmp.ne.s32.totalorder %s117, %s118
      %p130 = scmp.eq.s32.totalorder %s24, 1
      %p131 = por %p129, %p130
      %p133 = scmp.ne.s32.totalorder %s118, %s132
      %p134 = scmp.eq.s32.totalorder %s24, 0
      %p135 = por %p133, %p134
      %s137 = sadd.s32 %s136, 1
      %p140 = scmp.eq.s32.totalorder %s18, 1
      %p141 = scmp.ne.s32.totalorder %s136, %s138
      %p142 = scmp.eq.s32.totalorder %s18, 0
      %p143 = por %p141, %p142
      %p144 = scmp.ne.s32.totalorder %s136, %s138
      %p145 = scmp.eq.s32.totalorder %s23, 1
      %p146 = por %p144, %p145
      %p147 = scmp.ne.s32.totalorder %s138, %s139
      %p148 = scmp.eq.s32.totalorder %s23, 0
      %p149 = por %p147, %p148
      %p150 = scmp.ne.s32.totalorder %s138, %s139
      %p151 = scmp.eq.s32.totalorder %s24, 1
      %p152 = por %p150, %p151
      %p154 = scmp.ne.s32.totalorder %s139, %s153
      %p155 = scmp.eq.s32.totalorder %s24, 0
      %p156 = por %p154, %p155
      %s157 = ssub.s32 %s18, %s25
      %p158 = scmp.eq.s32.totalorder %s157, 0
      %s160 = sadd.s32 %s159, 1
      %s161 = scalar_select %p158, %s159, %s160
      %p164 = pneg %p158
      %p165 = scmp.eq.s32.totalorder %s18, 1
      %p166 = por %p164, %p165
      %p167 = scmp.ne.s32.totalorder %s159, %s162
      %p168 = scmp.eq.s32.totalorder %s18, 0
      %p169 = por %p167, %p168
      %p170 = scmp.ne.s32.totalorder %s159, %s162
      %p171 = scmp.eq.s32.totalorder %s23, 1
      %p172 = por %p170, %p171
      %p173 = scmp.ne.s32.totalorder %s162, %s163
      %p174 = scmp.eq.s32.totalorder %s23, 0
      %p175 = por %p173, %p174
      %p176 = scmp.ne.s32.totalorder %s162, %s163
      %p177 = scmp.eq.s32.totalorder %s24, 1
      %p178 = por %p176, %p177
      %p180 = scmp.ne.s32.totalorder %s163, %s179
      %p181 = scmp.eq.s32.totalorder %s24, 0
      %p182 = por %p180, %p181
      %p183 = scmp.le.s32.totalorder 1, %s18
      %p184 = scmp.lt.s32.totalorder %s18, 3
      %p185 = pnand %p183, %p184
      %p186 = pneg %p185
      // Predicated region
      $region9: #{tpu_custom_call.1} parent=5 // pred_check
        _
      $region10: #{tpu_custom_call.1} parent=5 // pred_check_branch
        %188 = sbr.rel (%p185) target = $region12
      $region11: #{tpu_custom_call.1} parent=5 // pred_region
        %s189 = ssub.s32 %s18, 1
        // Predicated region
        $region13: #{tpu_custom_call.1} parent=11 // pred_check
          %p190 = pneg %p65
        $region14: #{tpu_custom_call.1} parent=11 // pred_check_branch
          %192 = sbr.rel (%p190) target = $region16
        $region15: #{tpu_custom_call.1} parent=11 // pred_region
          _
        $region16: #{tpu_custom_call.1} parent=11 // pred_fallthru
          _
        // Predicated region
        $region17: #{tpu_custom_call.1} parent=11 // pred_check
          %p193 = pneg %p86
        $region18: #{tpu_custom_call.1} parent=11 // pred_check_branch
          %195 = sbr.rel (%p193) target = $region20
        $region19: #{tpu_custom_call.1} parent=11 // pred_region
          _
        $region20: #{tpu_custom_call.1} parent=11 // pred_fallthru
          _
        // Predicated region
        $region21: #{tpu_custom_call.1} parent=11 // pred_check
          %p196 = pneg %p107
        $region22: #{tpu_custom_call.1} parent=11 // pred_check_branch
          %198 = sbr.rel (%p196) target = $region24
        $region23: #{tpu_custom_call.1} parent=11 // pred_region
          _
        $region24: #{tpu_custom_call.1} parent=11 // pred_fallthru
          _
        // Predicated region
        $region25: #{tpu_custom_call.1} parent=11 // pred_check
          %p199 = pneg %p128
        $region26: #{tpu_custom_call.1} parent=11 // pred_check_branch
          %201 = sbr.rel (%p199) target = $region28
        $region27: #{tpu_custom_call.1} parent=11 // pred_region
          _
        $region28: #{tpu_custom_call.1} parent=11 // pred_fallthru
          _
        // Predicated region
        $region29: #{tpu_custom_call.1} parent=11 // pred_check
          %p202 = pneg %p149
        $region30: #{tpu_custom_call.1} parent=11 // pred_check_branch
          %204 = sbr.rel (%p202) target = $region32
        $region31: #{tpu_custom_call.1} parent=11 // pred_region
          _
        $region32: #{tpu_custom_call.1} parent=11 // pred_fallthru
          _
      $region12: #{tpu_custom_call.1} parent=5 // pred_fallthru
        _
      %p205 = scmp.lt.s32.totalorder %s18, 2
      // Predicated region
      $region33: #{tpu_custom_call.1} parent=5 // pred_check
        %p206 = pneg %p205
      $region34: #{tpu_custom_call.1} parent=5 // pred_check_branch
        %208 = sbr.rel (%p206) target = $region36
      $region35: #{tpu_custom_call.1} parent=5 // pred_region
        // Predicated region
        $region37: #{tpu_custom_call.1} parent=35 // pred_check
          %p209 = pneg %p38
        $region38: #{tpu_custom_call.1} parent=35 // pred_check_branch
          %211 = sbr.rel (%p209) target = $region40
        $region39: #{tpu_custom_call.1} parent=35 // pred_region
          %s212 = sand.u32 %s28, 1
          %s213 = scalar_lea.sflag [#allocation3], %s212
          %s214 = sand.u32 %s28, 1
          %s215 = smul.addr %s214, 16
          %s216 = scalar_lea.vmem [#allocation2], %s215
          %s218 = ssub.s32 256, 256
          %219 = vsyncadd %s213, %s218
          %s220 = smul.addr %s18, 2
          %s221 = smul.addr %s220, 128
          %s222 = scalar_lea.hbm %s0, %s221
          %s224 = sshll.u32 %s216, 4
          %s225 = int_to_ptr.vmem [resolvable:$true] %s224
          %227 = dma.hbm_to_vmem [thread:$0]  %s222, 256, %s225, %s213
        $region40: #{tpu_custom_call.1} parent=35 // pred_fallthru
          _
      $region36: #{tpu_custom_call.1} parent=5 // pred_fallthru
        _
      %p228 = scmp.le.s32.totalorder 1, %s18
      %p229 = scmp.lt.s32.totalorder %s18, 3
      %p230 = pnand %p228, %p229
      %p231 = pneg %p230
      // Predicated region
      $region41: #{tpu_custom_call.1} parent=5 // pred_check
        _
      $region42: #{tpu_custom_call.1} parent=5 // pred_check_branch
        %233 = sbr.rel (%p230) target = $region44
      $region43: #{tpu_custom_call.1} parent=5 // pred_region
        %s234 = ssub.s32 %s18, 1
        %s235 = sand.u32 %s31, 1
        %s236 = scalar_lea.sflag [#allocation3], %s235
        %s237 = sand.u32 %s31, 1
        %s238 = smul.addr %s237, 16
        %s239 = scalar_lea.vmem [#allocation2], %s238
        // Predicated region
        $region45: #{tpu_custom_call.1} parent=43 // pred_check
          %p240 = pneg %p44
        $region46: #{tpu_custom_call.1} parent=43 // pred_check_branch
          %242 = sbr.rel (%p240) target = $region48
        $region47: #{tpu_custom_call.1} parent=43 // pred_region
          %243 = dma.done %s236, 256
        $region48: #{tpu_custom_call.1} parent=43 // pred_fallthru
          _
        %s244 = sand.u32 %s31, 1
        %s245 = scalar_lea.sflag [#allocation3], %s244
        %s246 = sand.u32 %s31, 1
        %s247 = smul.addr %s246, 16
        %s248 = scalar_lea.vmem [#allocation2], %s247
        %p249 = pneg %p44
        %p250 = pneg %p41
        %p251 = pneg %p65
        %p252 = pneg %p62
        %p253 = pneg %p86
        %p254 = pneg %p83
        %p255 = pneg %p107
        %p256 = pneg %p104
        %p257 = pneg %p128
        %p258 = pneg %p125
        %p259 = pneg %p149
        %p260 = pneg %p146
        %p261 = pneg %p175
        %p262 = pneg %p172
        %s263 = sand.u32 %s162, 1
        %s264 = scalar_lea.sflag [#allocation4], %s263
        %s265 = sand.u32 %s162, 1
        %s266 = smul.addr %s265, 16
        %s267 = scalar_lea.vmem [#allocation5], %s266
        %v268 = vld [vmem:[%s239] sm:$0xff]
        %v269 = vld [vmem:[%s239 + $0x8] sm:$0xff]
        %v270 = vld [vmem:[%s1] sm:$0x1]
        %vm271 = vcmask 64512
        %v273 = vsel %vm271, %v270, 0
        %275 = vmatprep.subr.mxu0 %v269
        %276 = vmatpush1.msra.mxu0 %v268
        %277 = vmatprep.subr.mxu0 0.0
        %278 = vmatpush1.msra.mxu0 0.0
        %279 = vmatprep.subr.mxu0 0.0
        %280 = vmatpush1.msra.mxu0 0.0
        %281 = vmatprep.subr.mxu0 0.0
        %282 = vmatpush1.msra.mxu0 0.0
        %283 = vmatprep.subr.mxu0 0.0
        %284 = vmatpush1.msra.mxu0 0.0
        %285 = vmatprep.subr.mxu0 0.0
        %286 = vmatpush1.msra.mxu0 0.0
        %287 = vmatprep.subr.mxu0 0.0
        %288 = vmatpush1.msra.mxu0 0.0
        %289 = vmatprep.subr.mxu0 0.0
        %290 = vmatpush1.msra.mxu0 0.0
        %291 = vmatprep.subr.mxu0 0.0
        %292 = vmatpush1.msra.mxu0 0.0
        %293 = vmatprep.subr.mxu0 0.0
        %294 = vmatpush1.msra.mxu0 0.0
        %295 = vmatprep.subr.mxu0 0.0
        %296 = vmatpush1.msra.mxu0 0.0
        %297 = vmatprep.subr.mxu0 0.0
        %298 = vmatpush1.msra.mxu0 0.0
        %299 = vmatprep.subr.mxu0 0.0
        %300 = vmatpush1.msra.mxu0 0.0
        %301 = vmatprep.subr.mxu0 0.0
        %302 = vmatpush1.msra.mxu0 0.0
        %303 = vmatprep.subr.mxu0 0.0
        %304 = vmatpush1.msra.mxu0 0.0
        %305 = vmatprep.subr.mxu0 0.0
        %306 = vmatpush1.msra.mxu0 0.0
        %307 = vmatprep.subr.mxu0 0.0
        %308 = vmatpush1.msra.mxu0 0.0
        %309 = vmatprep.subr.mxu0 0.0
        %310 = vmatpush1.msra.mxu0 0.0
        %311 = vmatprep.subr.mxu0 0.0
        %312 = vmatpush1.msra.mxu0 0.0
        %313 = vmatprep.subr.mxu0 0.0
        %314 = vmatpush1.msra.mxu0 0.0
        %315 = vmatprep.subr.mxu0 0.0
        %316 = vmatpush1.msra.mxu0 0.0
        %317 = vmatprep.subr.mxu0 0.0
        %318 = vmatpush1.msra.mxu0 0.0
        %319 = vmatprep.subr.mxu0 0.0
        %320 = vmatpush1.msra.mxu0 0.0
        %321 = vmatprep.subr.mxu0 0.0
        %322 = vmatpush1.msra.mxu0 0.0
        %323 = vmatprep.subr.mxu0 0.0
        %324 = vmatpush1.msra.mxu0 0.0
        %325 = vmatprep.subr.mxu0 0.0
        %326 = vmatpush1.msra.mxu0 0.0
        %327 = vmatprep.subr.mxu0 0.0
        %328 = vmatpush1.msra.mxu0 0.0
        %329 = vmatprep.subr.mxu0 0.0
        %330 = vmatpush1.msra.mxu0 0.0
        %331 = vmatprep.subr.mxu0 0.0
        %332 = vmatpush1.msra.mxu0 0.0
        %333 = vmatprep.subr.mxu0 0.0
        %334 = vmatpush1.msra.mxu0 0.0
        %335 = vmatprep.subr.mxu0 0.0
        %336 = vmatpush1.msra.mxu0 0.0
        %337 = vmatprep.subr.mxu0 0.0
        %338 = vmatpush1.msra.mxu0 0.0
        %339 = vmatprep.mubr.f32.mxu0 0.0
        %340 = vmatmul.mubr.f32.gmra.mrb[0].mxu0 %v273
        %v341 = vpop.f32.mrb[0].mxu0
        %v342 = vadd.f32 0.0, %v341
        %v343 = vpop.f32.mrb[0].mxu0
        %v344 = vadd.f32 0.0, %v343
        %345 = vdwg.mxu0
        %vm346 = vcmask 1040384
        %v347 = vsel %vm346, %v342, -inf
        %v348 = vsel %vm346, %v344, -inf
        %v349 = vmax.f32 %v347, %v348
        %350 = vmax.xlane.f32.xlu0 %v349
        %v351 = vpop.xlane.xlu0 %350
        %v352 = vsub.f32 %v342, %v351
        %v353 = vsub.f32 %v344, %v351
        %v354 = vmul.f32 %v352, 1.442695
        %v355 = vpow.pop %v354
        %v356 = vmul.f32 %v353, 1.442695
        %v357 = vpow.pop %v356
        %v358 = vsel %vm346, %v355, 0.0
        %v359 = vsel %vm346, %v357, 0.0
        %v360 = vadd.f32 %v358, %v359
        %361 = vadd.xlane.f32.xlu0 %v360
        %v362 = vpop.xlane.xlu0 %361
        %v363 = vrcp.pop %v362
        %v364 = vmul.f32 1.0, %v363
        %v365 = vmul.f32 %v355, %v364
        %v366 = vmul.f32 %v357, %v364
        %367 = vmatprep.subr.mxu0 %v269
        %368 = vmatpush1.xpose.msra.mxu0 %v268
        %369 = vmatprep.subr.mxu0 0.0
        %370 = vmatpush1.xpose.msra.mxu0 0.0
        %371 = vmatprep.subr.mxu0 0.0
        %372 = vmatpush1.xpose.msra.mxu0 0.0
        %373 = vmatprep.subr.mxu0 0.0
        %374 = vmatpush1.xpose.msra.mxu0 0.0
        %375 = vmatprep.subr.mxu0 0.0
        %376 = vmatpush1.xpose.msra.mxu0 0.0
        %377 = vmatprep.subr.mxu0 0.0
        %378 = vmatpush1.xpose.msra.mxu0 0.0
        %379 = vmatprep.subr.mxu0 0.0
        %380 = vmatpush1.xpose.msra.mxu0 0.0
        %381 = vmatprep.subr.mxu0 0.0
        %382 = vmatpush1.xpose.msra.mxu0 0.0
        %383 = vmatprep.subr.mxu0 0.0
        %384 = vmatpush1.xpose.msra.mxu0 0.0
        %385 = vmatprep.subr.mxu0 0.0
        %386 = vmatpush1.xpose.msra.mxu0 0.0
        %387 = vmatprep.subr.mxu0 0.0
        %388 = vmatpush1.xpose.msra.mxu0 0.0
        %389 = vmatprep.subr.mxu0 0.0
        %390 = vmatpush1.xpose.msra.mxu0 0.0
        %391 = vmatprep.subr.mxu0 0.0
        %392 = vmatpush1.xpose.msra.mxu0 0.0
        %393 = vmatprep.subr.mxu0 0.0
        %394 = vmatpush1.xpose.msra.mxu0 0.0
        %395 = vmatprep.subr.mxu0 0.0
        %396 = vmatpush1.xpose.msra.mxu0 0.0
        %397 = vmatprep.subr.mxu0 0.0
        %398 = vmatpush1.xpose.msra.mxu0 0.0
        %399 = vmatprep.subr.mxu0 0.0
        %400 = vmatpush1.xpose.msra.mxu0 0.0
        %401 = vmatprep.subr.mxu0 0.0
        %402 = vmatpush1.xpose.msra.mxu0 0.0
        %403 = vmatprep.subr.mxu0 0.0
        %404 = vmatpush1.xpose.msra.mxu0 0.0
        %405 = vmatprep.subr.mxu0 0.0
        %406 = vmatpush1.xpose.msra.mxu0 0.0
        %407 = vmatprep.subr.mxu0 0.0
        %408 = vmatpush1.xpose.msra.mxu0 0.0
        %409 = vmatprep.subr.mxu0 0.0
        %410 = vmatpush1.xpose.msra.mxu0 0.0
        %411 = vmatprep.subr.mxu0 0.0
        %412 = vmatpush1.xpose.msra.mxu0 0.0
        %413 = vmatprep.subr.mxu0 0.0
        %414 = vmatpush1.xpose.msra.mxu0 0.0
        %415 = vmatprep.subr.mxu0 0.0
        %416 = vmatpush1.xpose.msra.mxu0 0.0
        %417 = vmatprep.subr.mxu0 0.0
        %418 = vmatpush1.xpose.msra.mxu0 0.0
        %419 = vmatprep.subr.mxu0 0.0
        %420 = vmatpush1.xpose.msra.mxu0 0.0
        %421 = vmatprep.subr.mxu0 0.0
        %422 = vmatpush1.xpose.msra.mxu0 0.0
        %423 = vmatprep.subr.mxu0 0.0
        %424 = vmatpush1.xpose.msra.mxu0 0.0
        %425 = vmatprep.subr.mxu0 0.0
        %426 = vmatpush1.xpose.msra.mxu0 0.0
        %427 = vmatprep.subr.mxu0 0.0
        %428 = vmatpush1.xpose.msra.mxu0 0.0
        %429 = vmatprep.subr.mxu0 0.0
        %430 = vmatpush1.xpose.msra.mxu0 0.0
        %431 = vmatprep.mubr.f32.mxu0 %v366
        %432 = vmatmul.mubr.f32.gmra.mrb[0].mxu0 %v365
        %v433 = vpop.f32.mrb[0].mxu0
        %v434 = vadd.f32 0.0, %v433
        %v435 = vpop.f32.mrb[0].mxu0
        %436 = vdwg.mxu0
        %v437 = vld [vmem:[%s2] sm:$0xf]
        %v438 = vld [vmem:[%s4] sm:$0xff]
        %v439 = vld [vmem:[%s3] sm:$0x1]
        %v441 = vsel %vm271, %v434, 0
        %v444 = vsel %vm271, %v437, 0
        %446 = vmatprep.subr.mxu0 0.0
        %447 = vmatpush1.xpose.msra.mxu0 %v444
        %448 = vmatprep.subr.mxu0 0.0
        %449 = vmatpush1.xpose.msra.mxu0 0.0
        %450 = vmatprep.subr.mxu0 0.0
        %451 = vmatpush1.xpose.msra.mxu0 0.0
        %452 = vmatprep.subr.mxu0 0.0
        %453 = vmatpush1.xpose.msra.mxu0 0.0
        %454 = vmatprep.subr.mxu0 0.0
        %455 = vmatpush1.xpose.msra.mxu0 0.0
        %456 = vmatprep.subr.mxu0 0.0
        %457 = vmatpush1.xpose.msra.mxu0 0.0
        %458 = vmatprep.subr.mxu0 0.0
        %459 = vmatpush1.xpose.msra.mxu0 0.0
        %460 = vmatprep.subr.mxu0 0.0
        %461 = vmatpush1.xpose.msra.mxu0 0.0
        %462 = vmatprep.subr.mxu0 0.0
        %463 = vmatpush1.xpose.msra.mxu0 0.0
        %464 = vmatprep.subr.mxu0 0.0
        %465 = vmatpush1.xpose.msra.mxu0 0.0
        %466 = vmatprep.subr.mxu0 0.0
        %467 = vmatpush1.xpose.msra.mxu0 0.0
        %468 = vmatprep.subr.mxu0 0.0
        %469 = vmatpush1.xpose.msra.mxu0 0.0
        %470 = vmatprep.subr.mxu0 0.0
        %471 = vmatpush1.xpose.msra.mxu0 0.0
        %472 = vmatprep.subr.mxu0 0.0
        %473 = vmatpush1.xpose.msra.mxu0 0.0
        %474 = vmatprep.subr.mxu0 0.0
        %475 = vmatpush1.xpose.msra.mxu0 0.0
        %476 = vmatprep.subr.mxu0 0.0
        %477 = vmatpush1.xpose.msra.mxu0 0.0
        %478 = vmatprep.subr.mxu0 0.0
        %479 = vmatpush1.xpose.msra.mxu0 0.0
        %480 = vmatprep.subr.mxu0 0.0
        %481 = vmatpush1.xpose.msra.mxu0 0.0
        %482 = vmatprep.subr.mxu0 0.0
        %483 = vmatpush1.xpose.msra.mxu0 0.0
        %484 = vmatprep.subr.mxu0 0.0
        %485 = vmatpush1.xpose.msra.mxu0 0.0
        %486 = vmatprep.subr.mxu0 0.0
        %487 = vmatpush1.xpose.msra.mxu0 0.0
        %488 = vmatprep.subr.mxu0 0.0
        %489 = vmatpush1.xpose.msra.mxu0 0.0
        %490 = vmatprep.subr.mxu0 0.0
        %491 = vmatpush1.xpose.msra.mxu0 0.0
        %492 = vmatprep.subr.mxu0 0.0
        %493 = vmatpush1.xpose.msra.mxu0 0.0
        %494 = vmatprep.subr.mxu0 0.0
        %495 = vmatpush1.xpose.msra.mxu0 0.0
        %496 = vmatprep.subr.mxu0 0.0
        %497 = vmatpush1.xpose.msra.mxu0 0.0
        %498 = vmatprep.subr.mxu0 0.0
        %499 = vmatpush1.xpose.msra.mxu0 0.0
        %500 = vmatprep.subr.mxu0 0.0
        %501 = vmatpush1.xpose.msra.mxu0 0.0
        %502 = vmatprep.subr.mxu0 0.0
        %503 = vmatpush1.xpose.msra.mxu0 0.0
        %504 = vmatprep.subr.mxu0 0.0
        %505 = vmatpush1.xpose.msra.mxu0 0.0
        %506 = vmatprep.subr.mxu0 0.0
        %507 = vmatpush1.xpose.msra.mxu0 0.0
        %508 = vmatprep.subr.mxu0 0.0
        %509 = vmatpush1.xpose.msra.mxu0 0.0
        %510 = vmatprep.mubr.f32.mxu0 0.0
        %511 = vmatmul.mubr.f32.gmra.mrb[0].mxu0 %v441
        %v512 = vpop.f32.mrb[0].mxu0
        %v513 = vadd.f32 %v439, %v512
        %v514 = vpop.f32.mrb[0].mxu0
        %515 = vdwg.mxu0
        %v516 = vmax.f32 %v513, 0.0
        %v517 = vld [vmem:[%s5] sm:$0x1]
        %vm518 = vcmask 31744
        %v520 = vsel %vm518, %v516, 0
        %v523 = vsel %vm518, %v438, 0
        %525 = vmatprep.subr.mxu0 0.0
        %526 = vmatpush1.xpose.msra.mxu0 %v523
        %527 = vmatprep.subr.mxu0 0.0
        %528 = vmatpush1.xpose.msra.mxu0 0.0
        %529 = vmatprep.subr.mxu0 0.0
        %530 = vmatpush1.xpose.msra.mxu0 0.0
        %531 = vmatprep.subr.mxu0 0.0
        %532 = vmatpush1.xpose.msra.mxu0 0.0
        %533 = vmatprep.subr.mxu0 0.0
        %534 = vmatpush1.xpose.msra.mxu0 0.0
        %535 = vmatprep.subr.mxu0 0.0
        %536 = vmatpush1.xpose.msra.mxu0 0.0
        %537 = vmatprep.subr.mxu0 0.0
        %538 = vmatpush1.xpose.msra.mxu0 0.0
        %539 = vmatprep.subr.mxu0 0.0
        %540 = vmatpush1.xpose.msra.mxu0 0.0
        %541 = vmatprep.subr.mxu0 0.0
        %542 = vmatpush1.xpose.msra.mxu0 0.0
        %543 = vmatprep.subr.mxu0 0.0
        %544 = vmatpush1.xpose.msra.mxu0 0.0
        %545 = vmatprep.subr.mxu0 0.0
        %546 = vmatpush1.xpose.msra.mxu0 0.0
        %547 = vmatprep.subr.mxu0 0.0
        %548 = vmatpush1.xpose.msra.mxu0 0.0
        %549 = vmatprep.subr.mxu0 0.0
        %550 = vmatpush1.xpose.msra.mxu0 0.0
        %551 = vmatprep.subr.mxu0 0.0
        %552 = vmatpush1.xpose.msra.mxu0 0.0
        %553 = vmatprep.subr.mxu0 0.0
        %554 = vmatpush1.xpose.msra.mxu0 0.0
        %555 = vmatprep.subr.mxu0 0.0
        %556 = vmatpush1.xpose.msra.mxu0 0.0
        %557 = vmatprep.subr.mxu0 0.0
        %558 = vmatpush1.xpose.msra.mxu0 0.0
        %559 = vmatprep.subr.mxu0 0.0
        %560 = vmatpush1.xpose.msra.mxu0 0.0
        %561 = vmatprep.subr.mxu0 0.0
        %562 = vmatpush1.xpose.msra.mxu0 0.0
        %563 = vmatprep.subr.mxu0 0.0
        %564 = vmatpush1.xpose.msra.mxu0 0.0
        %565 = vmatprep.subr.mxu0 0.0
        %566 = vmatpush1.xpose.msra.mxu0 0.0
        %567 = vmatprep.subr.mxu0 0.0
        %568 = vmatpush1.xpose.msra.mxu0 0.0
        %569 = vmatprep.subr.mxu0 0.0
        %570 = vmatpush1.xpose.msra.mxu0 0.0
        %571 = vmatprep.subr.mxu0 0.0
        %572 = vmatpush1.xpose.msra.mxu0 0.0
        %573 = vmatprep.subr.mxu0 0.0
        %574 = vmatpush1.xpose.msra.mxu0 0.0
        %575 = vmatprep.subr.mxu0 0.0
        %576 = vmatpush1.xpose.msra.mxu0 0.0
        %577 = vmatprep.subr.mxu0 0.0
        %578 = vmatpush1.xpose.msra.mxu0 0.0
        %579 = vmatprep.subr.mxu0 0.0
        %580 = vmatpush1.xpose.msra.mxu0 0.0
        %581 = vmatprep.subr.mxu0 0.0
        %582 = vmatpush1.xpose.msra.mxu0 0.0
        %583 = vmatprep.subr.mxu0 0.0
        %584 = vmatpush1.xpose.msra.mxu0 0.0
        %585 = vmatprep.subr.mxu0 0.0
        %586 = vmatpush1.xpose.msra.mxu0 0.0
        %587 = vmatprep.subr.mxu0 0.0
        %588 = vmatpush1.xpose.msra.mxu0 0.0
        %589 = vmatprep.mubr.f32.mxu0 0.0
        %590 = vmatmul.mubr.f32.gmra.mrb[0].mxu0 %v520
        %v591 = vpop.f32.mrb[0].mxu0
        %v592 = vadd.f32 %v517, %v591
        %v593 = vpop.f32.mrb[0].mxu0
        %594 = vdwg.mxu0
        %v595 = vlaneseq
        %v596 = vshrl.u32 %v595, 7
        %v597 = vsub.s32 0, %v596
        %v598 = vrot.slane %v592, %v597
        %600 = vbcast.lane.b32.xlu0 %v598, 256
        %v601 = vpop.permute.xlu0 %600
        %v602 = vadd.f32 %v268, %v601
        %v603 = vadd.f32 %v269, %v601
        %604 = vst [vmem:[%s267] sm:$0xff] %v602
        %605 = vst [vmem:[%s267 + $0x8] sm:$0xff] %v603
        %s606 = sand.u32 %s162, 1
        %s607 = scalar_lea.sflag [#allocation4], %s606
        %s608 = sand.u32 %s162, 1
        %s609 = smul.addr %s608, 16
        %s610 = scalar_lea.vmem [#allocation5], %s609
        // Predicated region
        $region49: #{tpu_custom_call.1} parent=43 // pred_check
          %p611 = pneg %p172
        $region50: #{tpu_custom_call.1} parent=43 // pred_check_branch
          %613 = sbr.rel (%p611) target = $region52
        $region51: #{tpu_custom_call.1} parent=43 // pred_region
          %s615 = ssub.s32 256, 256
          %616 = vsyncadd %s607, %s615
          %s617 = smul.addr %s23, 2
          %s618 = smul.addr %s617, 128
          %s619 = scalar_lea.hbm %s6, %s618
          %s621 = sshll.u32 %s610, 4
          %s622 = int_to_ptr.vmem [resolvable:$true] %s621
          %624 = dma.vmem_to_hbm [thread:$0]  %s622, 256, %s619, %s607
        $region52: #{tpu_custom_call.1} parent=43 // pred_fallthru
          _
      $region44: #{tpu_custom_call.1} parent=5 // pred_fallthru
        _
      %p625 = scmp.le.s32.totalorder 2, %s18
      // Predicated region
      $region53: #{tpu_custom_call.1} parent=5 // pred_check
        %p626 = pneg %p625
      $region54: #{tpu_custom_call.1} parent=5 // pred_check_branch
        %628 = sbr.rel (%p626) target = $region56
      $region55: #{tpu_custom_call.1} parent=5 // pred_region
        %s629 = ssub.s32 %s18, 2
        // Predicated region
        $region57: #{tpu_custom_call.1} parent=55 // pred_check
          %p630 = pneg %p178
        $region58: #{tpu_custom_call.1} parent=55 // pred_check_branch
          %632 = sbr.rel (%p630) target = $region60
        $region59: #{tpu_custom_call.1} parent=55 // pred_region
          %s633 = sand.u32 %s163, 1
          %s634 = scalar_lea.sflag [#allocation4], %s633
          %s635 = sand.u32 %s163, 1
          %s636 = smul.addr %s635, 16
          %s637 = scalar_lea.vmem [#allocation5], %s636
          %638 = dma.done %s634, 256
        $region60: #{tpu_custom_call.1} parent=55 // pred_fallthru
          _
      $region56: #{tpu_custom_call.1} parent=5 // pred_fallthru
        _
    $region6: #{tpu_custom_call.1} parent=1 // loop_footer
      %s22 = sadd.s32 1, %s18
    $region7: #{tpu_custom_call.1} parent=1 // loop_footer_branch
      %17 = sbr.rel target = $region3
    $region8: #{tpu_custom_call.1} parent=1 // loop_exit
      _
    %639 = vsyncpa [#allocation3], 1
    %s640 = scalar_lea.sflag [#allocation3], 1
    %641 = vsyncpa %s640, 1
    %642 = vsyncpa [#allocation4], 1
    %s643 = scalar_lea.sflag [#allocation4], 1
    %644 = vsyncpa %s643, 1

</llo_original>
